<compile_context>
chip_gen: v5e
topology: v5e:2x2
jax: 0.10.0
libtpu: 0.0.40
codegen_flags: <defaults>
</compile_context>

<pallas_src>
import jax
import jax.numpy as jnp
from jax import lax
from jax.experimental import pallas as pl
from jax.experimental.pallas import tpu as pltpu


_TARGET_TILE_BYTES = 8 * 1024 * 1024     # per input buffer (x2 double buffering)
_TK_MAX = 4096                           # lanes per reduction step (mult of 128)
_VMEM_LIMIT_BYTES = 32 * 1024 * 1024     # explicit scoped-VMEM limit (raises v5e's
                                         # 16 MiB default, within v7x 64 MiB phys)


def _round_up(x, m):
    return (x + m - 1) // m * m


def _min_value(dtype):
    if jnp.issubdtype(jnp.dtype(dtype), jnp.floating):
        return float("-inf")
    return int(jnp.iinfo(dtype).min)


def _pick_row_tile(total_rows, budget_rows, sub):
    """Row tile <= budget; if everything fits one tile, split into >=2 blocks
    (kept a multiple of `sub`) so v7x's two TensorCores both get work."""
    if budget_rows < total_rows:
        return budget_rows
    half = _round_up((total_rows + 1) // 2, sub)
    if half < total_rows:
        return half
    return total_rows


def _single_step_kernel(x_ref, o_ref):
    # x_ref: (tm, S) -> o_ref: (tm, 1); no accumulator, no branches, no mask.
    o_ref[...] = jnp.max(x_ref[...], axis=-1, keepdims=True)


def _grouped_kernel(x_ref, o_ref):
    # x_ref: (tg, 128, S) -> o_ref: (tg, 128); lane-dense output tile.
    o_ref[...] = jnp.max(x_ref[...], axis=-1)


def _make_reduce_kernel(tm, tk, spatial, min_val, need_mask):
    n_chunks = tk // 128

    def _fold_into_acc(acc_ref, xv):
        # Pure full-vreg VPU max into the lane-wide accumulator (no XLU).
        acc = acc_ref[...]
        for c in range(n_chunks):
            acc = jnp.maximum(acc, xv[:, c * 128:(c + 1) * 128])
        acc_ref[...] = acc

    def kernel(x_ref, o_ref, acc_ref):
        k = pl.program_id(1)
        last = pl.num_programs(1) - 1

        @pl.when(k == 0)
        def _init():
            acc_ref[...] = jnp.full(acc_ref.shape, min_val, acc_ref.dtype)

        if need_mask:  # static: ragged-lane mask only runs on the final tile
            @pl.when(k < last)
            def _steady():
                _fold_into_acc(acc_ref, x_ref[...])

            @pl.when(k == last)
            def _ragged():
                col = k * tk + lax.broadcasted_iota(jnp.int32, (1, tk), 1)
                _fold_into_acc(acc_ref,
                               jnp.where(col < spatial, x_ref[...], min_val))
        else:
            _fold_into_acc(acc_ref, x_ref[...])

        @pl.when(k == last)
        def _writeback():
            # Single 128->1 cross-lane reduce + (tm,1) store, once per row tile.
            o_ref[...] = jnp.max(acc_ref[...], axis=-1, keepdims=True)

    return kernel


def global_max_pool(x, n_dims=2):
    """Global max over the trailing `n_dims` dims, then torch-style .squeeze()."""
    shape = x.shape
    lead, spatial_dims = shape[:-n_dims], shape[-n_dims:]
    M = 1
    for d in lead:
        M *= d
    S = 1
    for d in spatial_dims:
        S *= d

    dtype = jnp.dtype(x.dtype)
    itemsize = dtype.itemsize
    sub = max(8, 32 // itemsize)          # sublane multiple: 8 f32, 16 bf16, 32 i8
    compiler_1d = pltpu.CompilerParams(
        dimension_semantics=("parallel",),
        vmem_limit_bytes=_VMEM_LIMIT_BYTES)

    x2d = x.reshape(M, S)

    if S < 128 and M % 128 == 0:
        # Small-S fast path: fold 128 rows into a middle axis (free row-major
        # reshape) so the output block is a lane-dense (tg, 128) tile.
        G = M // 128
        grp_bytes = 128 * _round_up(S, 128) * itemsize      # padded VMEM / group
        tg_budget = max(sub, (_TARGET_TILE_BYTES // grp_bytes) // sub * sub)
        tg = _pick_row_tile(G, tg_budget, sub)
        out = pl.pallas_call(
            _grouped_kernel,
            out_shape=jax.ShapeDtypeStruct((G, 128), dtype),
            grid=(pl.cdiv(G, tg),),
            in_specs=[pl.BlockSpec((tg, 128, S), lambda i: (i, 0, 0))],
            out_specs=pl.BlockSpec((tg, 128), lambda i: (i, 0)),
            compiler_params=compiler_1d,
        )(x2d.reshape(G, 128, S))
        flat = out.reshape(M)
    elif S <= _TK_MAX:
        # Single reduction step: whole spatial extent fits one tile.
        row_bytes = _round_up(S, 128) * itemsize            # padded VMEM / row
        tm_budget = max(sub, (_TARGET_TILE_BYTES // row_bytes) // sub * sub)
        tm = _pick_row_tile(M, tm_budget, sub)
        out = pl.pallas_call(
            _single_step_kernel,
            out_shape=jax.ShapeDtypeStruct((M, 1), dtype),
            grid=(pl.cdiv(M, tm),),
            in_specs=[pl.BlockSpec((tm, S), lambda i: (i, 0))],
            out_specs=pl.BlockSpec((tm, 1), lambda i: (i, 0)),
            compiler_params=compiler_1d,
        )(x2d)
        flat = out.reshape(M)
    else:
        # Multi-step reduction: tile the spatial axis, lane-wide running max.
        tk = _TK_MAX
        need_mask = (S % tk) != 0
        row_bytes = tk * itemsize                           # tk already lane-padded
        tm_budget = max(sub, (_TARGET_TILE_BYTES // row_bytes) // sub * sub)
        tm = _pick_row_tile(M, tm_budget, sub)
        grid = (pl.cdiv(M, tm), pl.cdiv(S, tk))
        # TODO(synk): bump in_spec to pipeline_mode=pl.Buffered(3) if xprof
        # still shows exposed strided-row DMA after the 8 MiB tiles.
        out = pl.pallas_call(
            _make_reduce_kernel(tm, tk, S, _min_value(dtype), need_mask),
            out_shape=jax.ShapeDtypeStruct((M, 1), dtype),
            grid=grid,
            in_specs=[pl.BlockSpec((tm, tk), lambda i, k: (i, k))],
            out_specs=pl.BlockSpec((tm, 1), lambda i, k: (i, 0)),
            scratch_shapes=[pltpu.VMEM((tm, 128), dtype)],
            compiler_params=pltpu.CompilerParams(
                dimension_semantics=("parallel", "arbitrary"),
                vmem_limit_bytes=_VMEM_LIMIT_BYTES),
        )(x2d)
        flat = out.reshape(M)

    # (M,) -> lead + (1,)*n_dims -> squeeze, matching torch .squeeze().
    return jnp.squeeze(flat.reshape(lead + (1,) * n_dims))


if __name__ == "__main__":
    key = jax.random.PRNGKey(0)
    k1, k2, k3 = jax.random.split(key, 3)

    # Primary shape from the module spec: NCHW, global max over (H, W).
    B, C, H, W = 2, 4, 16, 16
    x = jax.random.normal(k1, (B, C, H, W), dtype=jnp.float32)
    y = jax.block_until_ready(global_max_pool(x, n_dims=2))
    y_ref = jnp.squeeze(jnp.max(x, axis=(-2, -1), keepdims=True))
    assert y.shape == (B, C), y.shape
    assert jnp.allclose(y, y_ref), "mismatch vs reference (single-step path)"

    # Multi-step path with a ragged final reduction tile (68*68 = 4624 > 4096).
    x2 = jax.random.normal(k2, (2, 3, 68, 68), dtype=jnp.float32)
    y2 = jax.block_until_ready(global_max_pool(x2, n_dims=2))
    y2_ref = jnp.squeeze(jnp.max(x2, axis=(-2, -1), keepdims=True))
    assert y2.shape == (2, 3), y2.shape
    assert jnp.allclose(y2, y2_ref), "mismatch vs reference (multi-step/masked path)"

    # Small-S lane-dense grouped path (M = 4*32 = 128, S = 7*7 = 49).
    x3 = jax.random.normal(k3, (4, 32, 7, 7), dtype=jnp.float32)
    y3 = jax.block_until_ready(global_max_pool(x3, n_dims=2))
    y3_ref = jnp.squeeze(jnp.max(x3, axis=(-2, -1), keepdims=True))
    assert y3.shape == (4, 32), y3.shape
    assert jnp.allclose(y3, y3_ref), "mismatch vs reference (grouped small-S path)"

    print("KERNEL_OK")
</pallas_src>

<mosaic_0001>
module attributes {stable_mosaic.version = 11 : i64} {
  func.func @_single_step_kernel(%arg0: i32, %arg1: memref<8x256xf32, #tpu.memory_space<vmem>>, %arg2: memref<8x1xf32, #tpu.memory_space<vmem>>) attributes {dimension_semantics = [#tpu.dimension_semantics<parallel>], iteration_bounds = array<i64: 1>, scalar_prefetch = 0 : i64, scratch_operands = 0 : i64, tpu.core_type = #tpu.core_type<tc>, window_params = [{transform_indices = @transform_0, window_bounds = array<i64: 8, 256>}, {transform_indices = @transform_1, window_bounds = array<i64: 8, 1>}]} {
    %c0 = arith.constant 0 : index
    %c0_0 = arith.constant 0 : index
    %0 = vector.load %arg1[%c0, %c0_0] : memref<8x256xf32, #tpu.memory_space<vmem>>, vector<8x256xf32>
    %cst = arith.constant dense<0xFF800000> : vector<8xf32>
    %1 = vector.multi_reduction <maximumf>, %0, %cst [1] : vector<8x256xf32> to vector<8xf32>
    %2 = vector.shape_cast %1 : vector<8xf32> to vector<8x1xf32>
    %c0_1 = arith.constant 0 : index
    %c0_2 = arith.constant 0 : index
    %3 = vector.load %arg2[%c0_1, %c0_2] : memref<8x1xf32, #tpu.memory_space<vmem>>, vector<8x1xf32>
    tpu.vector_store %arg2[%c0_1, %c0_2], %2 {strides = array<i32>} : memref<8x1xf32, #tpu.memory_space<vmem>>, vector<8x1xf32>,
    return
  }
  func.func @transform_0(%arg0: i32) -> (i32, i32) {
    %c0_i32 = arith.constant 0 : i32
    %c0_i32_0 = arith.constant 0 : i32
    return %arg0, %c0_i32 : i32, i32
  }
  func.func @transform_1(%arg0: i32) -> (i32, i32) {
    %c0_i32 = arith.constant 0 : i32
    %c0_i32_0 = arith.constant 0 : i32
    return %arg0, %c0_i32 : i32, i32
  }
}

</mosaic_0001>

<llo_original>
// kernel: tpu_custom_call.1
$region0: #{tpu_custom_call.1}
  #allocation0 [shape = 'u32[]', space=smem, size = 0x4, offset = 0x4, fixed_abs, tag = 'smem constant byte address 0x4 - core index']
  #allocation1 [shape = 'u32[72,128]{1,0:T(1,128)}', space=vmem, size = 0x9000, scoped, tag = 'internal scratch']
  %s0 = inlined_call_operand.hbm [shape: f32[8,256], index: 0, kind: input, shape index: {}]
  %s1 = inlined_call_operand.vmem [shape: f32[8,1], index: 1, kind: output, shape index: {}]
  %s2 = sld [smem:[#allocation0]]
  $region18: #{tpu_custom_call.1} parent=0
    _
  %s4 = ssub.s32 1, %s2
  %s5 = scalar_select 0, %s4, %s2
  $region1: #{tpu_custom_call.1} parent=0
    #allocation2 [shape = 'u8[8192]{0}', space=vmem, size = 0x2000, scoped, tag = 'input window, operand 0, single buffered']
    #allocation3 [shape = 's32[1]{0}', space=sflag, size = 0x4, scoped, tag = 'scoped memory for tpu_custom_call.1']
    %6 = vsyncpa [#allocation3], 0
    // Predicated region
    $region2: #{tpu_custom_call.1} parent=1 // pred_check
      _
    $region3: #{tpu_custom_call.1} parent=1 // pred_check_branch
      %8 = sbr.rel (0) target = $region5
    $region4: #{tpu_custom_call.1} parent=1 // pred_region
      %10 = vsyncadd [#allocation3], 0
      %s12 = sshll.u32 %s0, 4
      %s13 = int_to_ptr.hbm [resolvable:$true] %s12
      %s14 = sshll.u32 [#allocation2], 4
      %s15 = int_to_ptr.vmem [resolvable:$true] %s14
      %17 = dma.hbm_to_vmem [thread:$0]  %s13, 256, %s15, [#allocation3]
    $region5: #{tpu_custom_call.1} parent=1 // pred_fallthru
      _
    // Predicated region
    $region6: #{tpu_custom_call.1} parent=1 // pred_check
      _
    $region7: #{tpu_custom_call.1} parent=1 // pred_check_branch
      %19 = sbr.rel (0) target = $region9
    $region8: #{tpu_custom_call.1} parent=1 // pred_region
      %21 = dma.done [#allocation3], 256
    $region9: #{tpu_custom_call.1} parent=1 // pred_fallthru
      _
    %v22 = vld [vmem:[#allocation2] sm:$0xff]
    %v23 = vld [vmem:[#allocation2 + $0x8] sm:$0xff]
    %v24 = vmax.f32 %v22, %v23
    %25 = vmax.xlane.f32.xlu0 %v24
    %v26 = vpop.xlane.xlu0 %25
    %vm27 = vcmask 7168
    %28 = vst.msk [vmem:[%s1] sm:$0xff] %vm27, %v26
    // Predicated region
    $region10: #{tpu_custom_call.1} parent=1 // pred_check
      _
    $region11: #{tpu_custom_call.1} parent=1 // pred_check_branch
      %30 = sbr.rel (0) target = $region13
    $region12: #{tpu_custom_call.1} parent=1 // pred_region
      _
    $region13: #{tpu_custom_call.1} parent=1 // pred_fallthru
      _
    // Predicated region
    $region14: #{tpu_custom_call.1} parent=1 // pred_check
      _
    $region15: #{tpu_custom_call.1} parent=1 // pred_check_branch
      %32 = sbr.rel (0) target = $region17
    $region16: #{tpu_custom_call.1} parent=1 // pred_region
      _
    $region17: #{tpu_custom_call.1} parent=1 // pred_fallthru
      _
    %33 = vsyncpa [#allocation3], 1

</llo_original>
